<compile_context>
chip_gen: v7x
topology: tpu7x:2x2x1
jax: 0.10.0
libtpu: 0.0.40
codegen_flags: <defaults>
</compile_context>

<pallas_src>
import jax
import jax.numpy as jnp
from jax.experimental import pallas as pl
from jax.experimental.pallas import tpu as pltpu


def _softplus(x):
    # Numerically-stable softplus, matches torch.nn.functional.softplus.
    return jnp.maximum(x, 0.0) + jnp.log1p(jnp.exp(-jnp.abs(x)))


def _round_up(n, m):
    return ((n + m - 1) // m) * m


# --------------------------------------------------------------------------
# Kernels
# --------------------------------------------------------------------------
def _encoder_resident_kernel(x_ref, w1_ref, b1_ref, w2_ref, b2_ref, o_ref):
    """Whole-vocab fc1 + softplus + fc2 + softplus for one batch tile.
    w1/w2/biases have constant block indices -> stay resident in VMEM."""
    h1 = jnp.dot(x_ref[...], w1_ref[...], preferred_element_type=jnp.float32)
    h1 = _softplus(h1 + b1_ref[...])                         # f32, (bm, Hp)
    h2 = jnp.dot(h1.astype(w2_ref.dtype), w2_ref[...],
                 preferred_element_type=jnp.float32)
    # TODO(synk): nn.Dropout is stochastic in train mode; eval-mode dropout is
    # identity (add pltpu.prng_* masking if a training path is ever needed).
    o_ref[...] = _softplus(h2 + b2_ref[...]).astype(o_ref.dtype)


def _encoder_ktiled_kernel(x_ref, w1_ref, b1_ref, w2_ref, b2_ref, o_ref,
                           acc_ref):
    """Large-vocab path: stream (bm,tk) x-slabs and (tk,Hp) w1-slabs, f32
    accumulator; fused bias/softplus/fc2/softplus epilogue on the last k."""
    k = pl.program_id(1)

    @pl.when(k == 0)
    def _():
        # Initialise the accumulator with the fc1 bias (drops the epilogue add).
        acc_ref[...] = jnp.broadcast_to(b1_ref[...], acc_ref.shape).astype(
            jnp.float32)

    acc_ref[...] += jnp.dot(
        x_ref[...], w1_ref[...], preferred_element_type=jnp.float32)

    @pl.when(k == pl.num_programs(1) - 1)
    def _():
        h1 = _softplus(acc_ref[...])                          # f32, (bm, Hp)
        h2 = jnp.dot(h1.astype(w2_ref.dtype), w2_ref[...],
                     preferred_element_type=jnp.float32)
        o_ref[...] = _softplus(h2 + b2_ref[...]).astype(o_ref.dtype)


# --------------------------------------------------------------------------
# Host-side wrappers
# --------------------------------------------------------------------------
def prepare_encoder_params(w1, b1, w2, b2, *, compute_dtype=jnp.float32):
    """One-time parameter prep (do NOT repeat per call):
      * pad hidden dim to a lane-dense multiple of 128 (non-128 last dims cost
        ~4.5x on the store path),
      * cast weights to the MXU compute dtype (bf16 recommended on all gens
        for this HBM-bound op), biases stay f32.
    Zero-padding w2's extra *rows* guarantees the padded h1 columns (which are
    softplus(0)=log2, not 0) contribute nothing to fc2."""
    V, H = w1.shape
    Hp = _round_up(H, 128)
    b1 = jnp.reshape(b1, (1, H))
    b2 = jnp.reshape(b2, (1, H))
    if Hp != H:
        w1 = jnp.pad(w1, ((0, 0), (0, Hp - H)))
        b1 = jnp.pad(b1, ((0, 0), (0, Hp - H)))
        w2 = jnp.pad(w2, ((0, Hp - H), (0, Hp - H)))
        b2 = jnp.pad(b2, ((0, 0), (0, Hp - H)))
    return {
        "w1": w1.astype(compute_dtype),
        "b1": b1.astype(jnp.float32),
        "w2": w2.astype(compute_dtype),
        "b2": b2.astype(jnp.float32),
        "hidden": H,
        "compute_dtype": jnp.dtype(compute_dtype),
    }


def encoder_forward(x, params, *, bm=None, tk=1024,
                    vmem_budget_bytes=12 << 20):
    """x: [B, V] -> [B, H] using prepared params (see prepare_encoder_params).

    bm: batch tile (default: sized to the real batch, capped at 256).
    tk: vocab reduction tile for the large-vocab streaming path.
    vmem_budget_bytes: if the estimated double-buffered working set with w1
      held resident fits this budget, the single-pass resident-w1 path is used
      (safe under default scoped VMEM on v5e/v6e/v7x); otherwise k-tiled.
    """
    w1, b1, w2, b2 = params["w1"], params["b1"], params["w2"], params["b2"]
    H = params["hidden"]
    compute_dtype = params["compute_dtype"]

    B, V = x.shape
    Vw, Hp = w1.shape
    assert Vw == V, "vocab size mismatch between x and prepared w1"
    out_dtype = x.dtype

    # Only per-call cast: x -> compute dtype (skipped if the caller already
    # supplies x in the compute dtype).
    if x.dtype != compute_dtype:
        x = x.astype(compute_dtype)

    # Batch tile: size to the real batch (multiple of 8 sublanes), capped at
    # 256 to fill the 256-wide MXU M dim on v6e/v7x (v5e splits internally).
    # Note(v7x): if this leaves nb == 1, the second TensorCore idles; shrink
    # bm for very small-batch, large-V cases if that matters.
    if bm is None:
        bm = min(_round_up(max(B, 8), 8), 256)
    nb = pl.cdiv(B, bm)
    Bp = nb * bm
    if Bp != B:
        x = jnp.pad(x, ((0, Bp - B), (0, 0)))

    itemsize = jnp.dtype(compute_dtype).itemsize
    out_itemsize = jnp.dtype(out_dtype).itemsize
    # Estimated VMEM working set if w1 is held resident (inputs double-buffered
    # by the Pallas pipeline even when their block index is constant).
    resident_vmem = (2 * bm * V * itemsize          # x slab
                     + 2 * V * Hp * itemsize        # w1 resident
                     + 2 * Hp * Hp * itemsize       # w2 resident
                     + 4 * 2 * Hp * 4               # biases (f32)
                     + 2 * bm * Hp * out_itemsize)  # output slab

    if resident_vmem <= vmem_budget_bytes:
        # ---- Resident-w1 path: one HBM pass over w1 and one over x. ----
        cost = pl.CostEstimate(
            flops=2 * Bp * (V * Hp + Hp * Hp),
            transcendentals=4 * Bp * Hp,   # exp + log1p per softplus, twice
            bytes_accessed=(Bp * V * itemsize
                            + V * Hp * itemsize
                            + Hp * Hp * itemsize
                            + 2 * Hp * 4
                            + Bp * Hp * out_itemsize),
        )
        out = pl.pallas_call(
            _encoder_resident_kernel,
            out_shape=jax.ShapeDtypeStruct((Bp, Hp), out_dtype),
            grid_spec=pltpu.PrefetchScalarGridSpec(
                num_scalar_prefetch=0,
                grid=(nb,),
                in_specs=[
                    pl.BlockSpec((bm, V), lambda i: (i, 0)),   # input slab
                    pl.BlockSpec((V, Hp), lambda i: (0, 0)),   # fc1 weight (resident)
                    pl.BlockSpec((1, Hp), lambda i: (0, 0)),   # fc1 bias (f32)
                    pl.BlockSpec((Hp, Hp), lambda i: (0, 0)),  # fc2 weight (resident)
                    pl.BlockSpec((1, Hp), lambda i: (0, 0)),   # fc2 bias (f32)
                ],
                out_specs=pl.BlockSpec((bm, Hp), lambda i: (i, 0)),
            ),
            compiler_params=pltpu.CompilerParams(
                dimension_semantics=("parallel",)),
            cost_estimate=cost,
        )(x, w1, b1, w2, b2)
    else:
        # ---- K-tiled streaming path (large vocab). ----
        nk = pl.cdiv(V, tk)
        Vp = nk * tk
        if Vp != V:
            # For large-vocab deployments pick tk | V (or pre-pad V once in
            # prepare) to avoid this per-call pad pass over w1.
            x = jnp.pad(x, ((0, 0), (0, Vp - V)))
            w1 = jnp.pad(w1, ((0, Vp - V), (0, 0)))
        cost = pl.CostEstimate(
            flops=2 * Bp * (Vp * Hp + Hp * Hp),
            transcendentals=4 * Bp * Hp,
            bytes_accessed=(Bp * Vp * itemsize
                            + nb * Vp * Hp * itemsize   # w1 re-streamed per batch tile
                            + nb * Hp * Hp * itemsize
                            + nb * 2 * Hp * 4
                            + Bp * Hp * out_itemsize),
        )
        out = pl.pallas_call(
            _encoder_ktiled_kernel,
            out_shape=jax.ShapeDtypeStruct((Bp, Hp), out_dtype),
            grid_spec=pltpu.PrefetchScalarGridSpec(
                num_scalar_prefetch=0,
                grid=(nb, nk),
                in_specs=[
                    pl.BlockSpec((bm, tk), lambda i, k: (i, k)),   # input slab
                    pl.BlockSpec((tk, Hp), lambda i, k: (k, 0)),   # fc1 weight slab
                    pl.BlockSpec((1, Hp), lambda i, k: (0, 0)),    # fc1 bias (f32)
                    pl.BlockSpec((Hp, Hp), lambda i, k: (0, 0)),   # fc2 weight
                    pl.BlockSpec((1, Hp), lambda i, k: (0, 0)),    # fc2 bias (f32)
                ],
                out_specs=pl.BlockSpec((bm, Hp), lambda i, k: (i, 0)),
                scratch_shapes=[pltpu.VMEM((bm, Hp), jnp.float32)],
            ),
            compiler_params=pltpu.CompilerParams(
                dimension_semantics=("parallel", "arbitrary")),
            cost_estimate=cost,
        )(x, w1, b1, w2, b2)

    out = out[:B] if Bp != B else out
    return out[:, :H] if Hp != H else out


def _reference(x, w1, b1, w2, b2):
    h1 = jax.nn.softplus(x @ w1 + jnp.reshape(b1, (1, -1)))
    h2 = jax.nn.softplus(h1 @ w2 + jnp.reshape(b2, (1, -1)))
    return h2


if __name__ == "__main__":
    # Small shapes consistent with the module; B deliberately not a multiple
    # of 128 to exercise the real-batch bm sizing.
    B, V, H = 48, 640, 128

    key = jax.random.PRNGKey(0)
    kx, kw1, kb1, kw2, kb2, kw1b, kb1b, kw2b, kb2b = jax.random.split(key, 9)

    x = jax.random.normal(kx, (B, V), dtype=jnp.float32)
    lim1 = 1.0 / (V ** 0.5)
    lim2 = 1.0 / (H ** 0.5)
    w1 = jax.random.uniform(kw1, (V, H), jnp.float32, -lim1, lim1)
    b1 = jax.random.uniform(kb1, (H,), jnp.float32, -lim1, lim1)
    w2 = jax.random.uniform(kw2, (H, H), jnp.float32, -lim2, lim2)
    b2 = jax.random.uniform(kb2, (H,), jnp.float32, -lim2, lim2)

    ref = _reference(x, w1, b1, w2, b2)

    # 1) f32, resident-w1 path (default for this small vocab): tight tolerance.
    p32 = prepare_encoder_params(w1, b1, w2, b2, compute_dtype=jnp.float32)
    out = jax.block_until_ready(encoder_forward(x, p32))
    assert out.shape == (B, H)
    assert jnp.allclose(out, ref, atol=3e-5, rtol=3e-5), "f32 resident mismatch"

    # 2) Forced K-tiled streaming path (large-vocab code path), with a tk that
    #    does not divide V to exercise the vocab padding + accumulator init.
    out_k = jax.block_until_ready(
        encoder_forward(x, p32, tk=256, vmem_budget_bytes=0))
    assert out_k.shape == (B, H)
    assert jnp.allclose(out_k, ref, atol=3e-5, rtol=3e-5), "k-tiled mismatch"

    # 3) bf16 compute path (recommended on v5e/v6e/v7x: halves HBM traffic,
    #    f32 accumulation): looser tolerance.
    pbf = prepare_encoder_params(w1, b1, w2, b2, compute_dtype=jnp.bfloat16)
    out_bf = jax.block_until_ready(encoder_forward(x, pbf))
    assert out_bf.shape == (B, H)
    assert jnp.allclose(out_bf, ref, atol=5e-2, rtol=5e-2), "bf16 mismatch"

    # 4) Non-128 hidden size (ProdLDA's default hidden=100): lane-dense Hp=128
    #    padding path, sliced back to H after the kernel.
    H2 = 100
    lim2b = 1.0 / (H2 ** 0.5)
    w1b = jax.random.uniform(kw1b, (V, H2), jnp.float32, -lim1, lim1)
    b1b = jax.random.uniform(kb1b, (H2,), jnp.float32, -lim1, lim1)
    w2b = jax.random.uniform(kw2b, (H2, H2), jnp.float32, -lim2b, lim2b)
    b2b = jax.random.uniform(kb2b, (H2,), jnp.float32, -lim2b, lim2b)
    refb = _reference(x, w1b, b1b, w2b, b2b)
    pb = prepare_encoder_params(w1b, b1b, w2b, b2b, compute_dtype=jnp.float32)
    outb = jax.block_until_ready(encoder_forward(x, pb))
    assert outb.shape == (B, H2)
    assert jnp.allclose(outb, refb, atol=3e-5, rtol=3e-5), "H=100 pad mismatch"

    print("KERNEL_OK")
</pallas_src>

<mosaic_0001>
module attributes {stable_mosaic.version = 11 : i64} {
  func.func @_encoder_resident_kernel(%arg0: i32, %arg1: memref<48x640xf32, #tpu.memory_space<vmem>>, %arg2: memref<640x128xf32, #tpu.memory_space<vmem>>, %arg3: memref<1x128xf32, #tpu.memory_space<vmem>>, %arg4: memref<128x128xf32, #tpu.memory_space<vmem>>, %arg5: memref<1x128xf32, #tpu.memory_space<vmem>>, %arg6: memref<48x128xf32, #tpu.memory_space<vmem>>) attributes {dimension_semantics = [#tpu.dimension_semantics<parallel>], iteration_bounds = array<i64: 1>, scalar_prefetch = 0 : i64, scratch_operands = 0 : i64, tpu.core_type = #tpu.core_type<tc>, window_params = [{transform_indices = @transform_0, window_bounds = array<i64: 48, 640>}, {pipeline_mode = #tpu.pipeline_mode<synchronous>, transform_indices = @transform_1, window_bounds = array<i64: 640, 128>}, {pipeline_mode = #tpu.pipeline_mode<synchronous>, transform_indices = @transform_2, window_bounds = array<i64: 1, 128>}, {pipeline_mode = #tpu.pipeline_mode<synchronous>, transform_indices = @transform_3, window_bounds = array<i64: 128, 128>}, {pipeline_mode = #tpu.pipeline_mode<synchronous>, transform_indices = @transform_4, window_bounds = array<i64: 1, 128>}, {transform_indices = @transform_5, window_bounds = array<i64: 48, 128>}]} {
    %c0 = arith.constant 0 : index
    %c0_0 = arith.constant 0 : index
    %0 = vector.load %arg1[%c0, %c0_0] : memref<48x640xf32, #tpu.memory_space<vmem>>, vector<48x640xf32>
    %c0_1 = arith.constant 0 : index
    %c0_2 = arith.constant 0 : index
    %1 = vector.load %arg2[%c0_1, %c0_2] : memref<640x128xf32, #tpu.memory_space<vmem>>, vector<640x128xf32>
    %cst = arith.constant dense<0.000000e+00> : vector<48x128xf32>
    %2 = tpu.matmul %0, %1, %cst {dimension_numbers = #tpu.dot_dimension_numbers<[1], [0], [0], [1], [0, 0, 1, 1], [], []>} : vector<48x640xf32>, vector<640x128xf32>, vector<48x128xf32> -> vector<48x128xf32>
    %c0_3 = arith.constant 0 : index
    %c0_4 = arith.constant 0 : index
    %3 = vector.load %arg3[%c0_3, %c0_4] : memref<1x128xf32, #tpu.memory_space<vmem>>, vector<1x128xf32>
    %4 = vector.broadcast %3 : vector<1x128xf32> to vector<48x128xf32>
    %5 = arith.addf %2, %4 : vector<48x128xf32>
    %cst_5 = arith.constant 0.000000e+00 : f32
    %6 = vector.broadcast %cst_5 : f32 to vector<48x128xf32>
    %7 = arith.maximumf %5, %6 : vector<48x128xf32>
    %8 = math.absf %5 : vector<48x128xf32>
    %cst_6 = arith.constant 0.000000e+00 : f32
    %9 = vector.broadcast %cst_6 : f32 to vector<48x128xf32>
    %10 = arith.subf %9, %8 : vector<48x128xf32>
    %11 = math.exp %10 : vector<48x128xf32>
    %12 = math.log1p %11 : vector<48x128xf32>
    %13 = arith.addf %7, %12 : vector<48x128xf32>
    %c0_7 = arith.constant 0 : index
    %c0_8 = arith.constant 0 : index
    %14 = vector.load %arg4[%c0_7, %c0_8] : memref<128x128xf32, #tpu.memory_space<vmem>>, vector<128x128xf32>
    %cst_9 = arith.constant dense<0.000000e+00> : vector<48x128xf32>
    %15 = tpu.matmul %13, %14, %cst_9 {dimension_numbers = #tpu.dot_dimension_numbers<[1], [0], [0], [1], [0, 0, 1, 1], [], []>} : vector<48x128xf32>, vector<128x128xf32>, vector<48x128xf32> -> vector<48x128xf32>
    %c0_10 = arith.constant 0 : index
    %c0_11 = arith.constant 0 : index
    %16 = vector.load %arg5[%c0_10, %c0_11] : memref<1x128xf32, #tpu.memory_space<vmem>>, vector<1x128xf32>
    %17 = vector.broadcast %16 : vector<1x128xf32> to vector<48x128xf32>
    %18 = arith.addf %15, %17 : vector<48x128xf32>
    %cst_12 = arith.constant 0.000000e+00 : f32
    %19 = vector.broadcast %cst_12 : f32 to vector<48x128xf32>
    %20 = arith.maximumf %18, %19 : vector<48x128xf32>
    %21 = math.absf %18 : vector<48x128xf32>
    %cst_13 = arith.constant 0.000000e+00 : f32
    %22 = vector.broadcast %cst_13 : f32 to vector<48x128xf32>
    %23 = arith.subf %22, %21 : vector<48x128xf32>
    %24 = math.exp %23 : vector<48x128xf32>
    %25 = math.log1p %24 : vector<48x128xf32>
    %26 = arith.addf %20, %25 : vector<48x128xf32>
    %c0_14 = arith.constant 0 : index
    %c0_15 = arith.constant 0 : index
    %27 = vector.load %arg6[%c0_14, %c0_15] : memref<48x128xf32, #tpu.memory_space<vmem>>, vector<48x128xf32>
    tpu.vector_store %arg6[%c0_14, %c0_15], %26 {strides = array<i32>} : memref<48x128xf32, #tpu.memory_space<vmem>>, vector<48x128xf32>,
    return
  }
  func.func @transform_0(%arg0: i32) -> (i32, i32) {
    %c0_i32 = arith.constant 0 : i32
    %c0_i32_0 = arith.constant 0 : i32
    return %arg0, %c0_i32 : i32, i32
  }
  func.func @transform_1(%arg0: i32) -> (i32, i32) {
    %c0_i32 = arith.constant 0 : i32
    %c0_i32_0 = arith.constant 0 : i32
    %c0_i32_1 = arith.constant 0 : i32
    return %c0_i32, %c0_i32_0 : i32, i32
  }
  func.func @transform_2(%arg0: i32) -> (i32, i32) {
    %c0_i32 = arith.constant 0 : i32
    %c0_i32_0 = arith.constant 0 : i32
    %c0_i32_1 = arith.constant 0 : i32
    return %c0_i32, %c0_i32_0 : i32, i32
  }
  func.func @transform_3(%arg0: i32) -> (i32, i32) {
    %c0_i32 = arith.constant 0 : i32
    %c0_i32_0 = arith.constant 0 : i32
    %c0_i32_1 = arith.constant 0 : i32
    return %c0_i32, %c0_i32_0 : i32, i32
  }
  func.func @transform_4(%arg0: i32) -> (i32, i32) {
    %c0_i32 = arith.constant 0 : i32
    %c0_i32_0 = arith.constant 0 : i32
    %c0_i32_1 = arith.constant 0 : i32
    return %c0_i32, %c0_i32_0 : i32, i32
  }
  func.func @transform_5(%arg0: i32) -> (i32, i32) {
    %c0_i32 = arith.constant 0 : i32
    %c0_i32_0 = arith.constant 0 : i32
    return %arg0, %c0_i32 : i32, i32
  }
}

</mosaic_0001>

<llo_original>
// kernel: tpu_custom_call.1
$region0: #{tpu_custom_call.1}
  #allocation0 [shape = 'u32[]', space=smem, size = 0x4, offset = 0x4, fixed_abs, tag = 'smem constant byte address 0x4 - core index']
  #allocation1 [shape = 'u32[144,128]{1,0:T(1,128)}', space=vmem, size = 0x12000, scoped, tag = 'internal scratch']
  %s0 = inlined_call_operand.hbm [shape: f32[48,640], index: 0, kind: input, shape index: {}]
  %s1 = inlined_call_operand.hbm [shape: f32[640,128], index: 1, kind: input, shape index: {}]
  %s2 = inlined_call_operand.vmem [shape: f32[1,128], index: 2, kind: input, shape index: {}]
  %s3 = inlined_call_operand.hbm [shape: f32[128,128], index: 3, kind: input, shape index: {}]
  %s4 = inlined_call_operand.vmem [shape: f32[1,128], index: 4, kind: input, shape index: {}]
  %s5 = inlined_call_operand.hbm [shape: f32[48,128], index: 5, kind: output, shape index: {}]
  %s6 = sld [smem:[#allocation0]]
  $region42: #{tpu_custom_call.1} parent=0
    _
  %s8 = ssub.s32 1, %s6
  %s9 = scalar_select 0, %s8, %s6
  $region1: #{tpu_custom_call.1} parent=0
    #allocation2 [shape = 'u8[122880]{0}', space=vmem, size = 0x1e000, scoped, tag = 'input window, operand 0, single buffered']
    #allocation3 [shape = 's32[1]{0}', space=sflag, size = 0x4, scoped, tag = 'scoped memory for tpu_custom_call.1']
    #allocation4 [shape = 's32[1]{0}', space=sflag, size = 0x4, scoped, tag = 'scoped memory for tpu_custom_call.1']
    #allocation5 [shape = 'u8[327680]{0}', space=vmem, size = 0x50000, scoped, tag = 'input window, operand 1, single buffered']
    #allocation6 [shape = 's32[1]{0}', space=sflag, size = 0x4, scoped, tag = 'scoped memory for tpu_custom_call.1']
    #allocation7 [shape = 'u8[65536]{0}', space=vmem, size = 0x10000, scoped, tag = 'input window, operand 3, single buffered']
    #allocation8 [shape = 'u8[24576]{0}', space=vmem, size = 0x6000, scoped, tag = 'output window, operand 0, single buffered']
    %10 = vsyncpa [#allocation3], 0
    %11 = vsyncpa [#allocation6], 0
    %12 = vsyncpa [#allocation4], 0
    // Predicated region
    $region2: #{tpu_custom_call.1} parent=1 // pred_check
      _
    $region3: #{tpu_custom_call.1} parent=1 // pred_check_branch
      %14 = sbr.rel (0) target = $region5
    $region4: #{tpu_custom_call.1} parent=1 // pred_region
      %s16 = ssub.s32 3840, 3840
      %17 = vsyncadd [#allocation3], %s16
      %s18 = sshll.u32 [#allocation2], 4
      %s19 = int_to_ptr.vmem [resolvable:$true] %s18
      %24 = dma.hbm_to_vmem [thread:$0]  %s0, 3840, %s19, [#allocation3], 640, 640, 40
    $region5: #{tpu_custom_call.1} parent=1 // pred_fallthru
      _
    // Predicated region
    $region6: #{tpu_custom_call.1} parent=1 // pred_check
      _
    $region7: #{tpu_custom_call.1} parent=1 // pred_check_branch
      %26 = sbr.rel (0) target = $region9
    $region8: #{tpu_custom_call.1} parent=1 // pred_region
      %s28 = ssub.s32 10240, 10240
      %29 = vsyncadd [#allocation6], %s28
      %s30 = sshll.u32 [#allocation5], 4
      %s31 = int_to_ptr.vmem [resolvable:$true] %s30
      %36 = dma.hbm_to_vmem [thread:$0]  %s1, 10240, %s31, [#allocation6], 128, 128, 8
    $region9: #{tpu_custom_call.1} parent=1 // pred_fallthru
      _
    // Predicated region
    $region10: #{tpu_custom_call.1} parent=1 // pred_check
      _
    $region11: #{tpu_custom_call.1} parent=1 // pred_check_branch
      %38 = sbr.rel (0) target = $region13
    $region12: #{tpu_custom_call.1} parent=1 // pred_region
      _
    $region13: #{tpu_custom_call.1} parent=1 // pred_fallthru
      _
    // Predicated region
    $region14: #{tpu_custom_call.1} parent=1 // pred_check
      _
    $region15: #{tpu_custom_call.1} parent=1 // pred_check_branch
      %40 = sbr.rel (0) target = $region17
    $region16: #{tpu_custom_call.1} parent=1 // pred_region
      %s42 = ssub.s32 2048, 2048
      %43 = vsyncadd [#allocation6], %s42
      %s44 = sshll.u32 [#allocation7], 4
      %s45 = int_to_ptr.vmem [resolvable:$true] %s44
      %50 = dma.hbm_to_vmem [thread:$0]  %s3, 2048, %s45, [#allocation6], 128, 128, 8
    $region17: #{tpu_custom_call.1} parent=1 // pred_fallthru
      _
    // Predicated region
    $region18: #{tpu_custom_call.1} parent=1 // pred_check
      _
    $region19: #{tpu_custom_call.1} parent=1 // pred_check_branch
      %52 = sbr.rel (0) target = $region21
    $region20: #{tpu_custom_call.1} parent=1 // pred_region
      _
    $region21: #{tpu_custom_call.1} parent=1 // pred_fallthru
      _
    // Predicated region
    $region22: #{tpu_custom_call.1} parent=1 // pred_check
      _
    $region23: #{tpu_custom_call.1} parent=1 // pred_check_branch
      %54 = sbr.rel (0) target = $region25
    $region24: #{tpu_custom_call.1} parent=1 // pred_region
      %55 = dma.done [#allocation3], 3840
    $region25: #{tpu_custom_call.1} parent=1 // pred_fallthru
      _
    // Predicated region
    $region26: #{tpu_custom_call.1} parent=1 // pred_check
      _
    $region27: #{tpu_custom_call.1} parent=1 // pred_check_branch
      %57 = sbr.rel (0) target = $region29
    $region28: #{tpu_custom_call.1} parent=1 // pred_region
      %58 = dma.done [#allocation6], 10240
    $region29: #{tpu_custom_call.1} parent=1 // pred_fallthru
      _
    // Predicated region
    $region30: #{tpu_custom_call.1} parent=1 // pred_check
      _
    $region31: #{tpu_custom_call.1} parent=1 // pred_check_branch
      %60 = sbr.rel (0) target = $region33
    $region32: #{tpu_custom_call.1} parent=1 // pred_region
      %61 = dma.done [#allocation6], 2048
    $region33: #{tpu_custom_call.1} parent=1 // pred_fallthru
      _
    %v62 = vld [vmem:[#allocation2] sm:$0xff]
    %v63 = vld [vmem:[#allocation2 + $0x8] sm:$0xff]
    %v64 = vld [vmem:[#allocation2 + $0x10] sm:$0xff]
    %v65 = vld [vmem:[#allocation2 + $0x18] sm:$0xff]
    %v66 = vld [vmem:[#allocation2 + $0x20] sm:$0xff]
    %v67 = vld [vmem:[#allocation2 + $0x28] sm:$0xff]
    %v68 = vld [vmem:[#allocation2 + $0x30] sm:$0xff]
    %v69 = vld [vmem:[#allocation2 + $0x38] sm:$0xff]
    %v70 = vld [vmem:[#allocation2 + $0x40] sm:$0xff]
    %v71 = vld [vmem:[#allocation2 + $0x48] sm:$0xff]
    %v72 = vld [vmem:[#allocation2 + $0x50] sm:$0xff]
    %v73 = vld [vmem:[#allocation2 + $0x58] sm:$0xff]
    %v74 = vld [vmem:[#allocation2 + $0x60] sm:$0xff]
    %v75 = vld [vmem:[#allocation2 + $0x68] sm:$0xff]
    %v76 = vld [vmem:[#allocation2 + $0x70] sm:$0xff]
    %v77 = vld [vmem:[#allocation2 + $0x78] sm:$0xff]
    %v78 = vld [vmem:[#allocation2 + $0x80] sm:$0xff]
    %v79 = vld [vmem:[#allocation2 + $0x88] sm:$0xff]
    %v80 = vld [vmem:[#allocation2 + $0x90] sm:$0xff]
    %v81 = vld [vmem:[#allocation2 + $0x98] sm:$0xff]
    %v82 = vld [vmem:[#allocation2 + $0xa0] sm:$0xff]
    %v83 = vld [vmem:[#allocation2 + $0xa8] sm:$0xff]
    %v84 = vld [vmem:[#allocation2 + $0xb0] sm:$0xff]
    %v85 = vld [vmem:[#allocation2 + $0xb8] sm:$0xff]
    %v86 = vld [vmem:[#allocation2 + $0xc0] sm:$0xff]
    %v87 = vld [vmem:[#allocation2 + $0xc8] sm:$0xff]
    %v88 = vld [vmem:[#allocation2 + $0xd0] sm:$0xff]
    %v89 = vld [vmem:[#allocation2 + $0xd8] sm:$0xff]
    %v90 = vld [vmem:[#allocation2 + $0xe0] sm:$0xff]
    %v91 = vld [vmem:[#allocation2 + $0xe8] sm:$0xff]
    %v92 = vld [vmem:[#allocation5] sm:$0xff]
    %v93 = vld [vmem:[#allocation5 + $0x8] sm:$0xff]
    %v94 = vld [vmem:[#allocation5 + $0x10] sm:$0xff]
    %v95 = vld [vmem:[#allocation5 + $0x18] sm:$0xff]
    %v96 = vld [vmem:[#allocation5 + $0x20] sm:$0xff]
    %v97 = vld [vmem:[#allocation5 + $0x28] sm:$0xff]
    %v98 = vld [vmem:[#allocation5 + $0x30] sm:$0xff]
    %v99 = vld [vmem:[#allocation5 + $0x38] sm:$0xff]
    %v100 = vld [vmem:[#allocation5 + $0x40] sm:$0xff]
    %v101 = vld [vmem:[#allocation5 + $0x48] sm:$0xff]
    %v102 = vld [vmem:[#allocation5 + $0x50] sm:$0xff]
    %v103 = vld [vmem:[#allocation5 + $0x58] sm:$0xff]
    %v104 = vld [vmem:[#allocation5 + $0x60] sm:$0xff]
    %v105 = vld [vmem:[#allocation5 + $0x68] sm:$0xff]
    %v106 = vld [vmem:[#allocation5 + $0x70] sm:$0xff]
    %v107 = vld [vmem:[#allocation5 + $0x78] sm:$0xff]
    %v108 = vld [vmem:[#allocation5 + $0x80] sm:$0xff]
    %v109 = vld [vmem:[#allocation5 + $0x88] sm:$0xff]
    %v110 = vld [vmem:[#allocation5 + $0x90] sm:$0xff]
    %v111 = vld [vmem:[#allocation5 + $0x98] sm:$0xff]
    %v112 = vld [vmem:[#allocation5 + $0xa0] sm:$0xff]
    %v113 = vld [vmem:[#allocation5 + $0xa8] sm:$0xff]
    %v114 = vld [vmem:[#allocation5 + $0xb0] sm:$0xff]
    %v115 = vld [vmem:[#allocation5 + $0xb8] sm:$0xff]
    %v116 = vld [vmem:[#allocation5 + $0xc0] sm:$0xff]
    %v117 = vld [vmem:[#allocation5 + $0xc8] sm:$0xff]
    %v118 = vld [vmem:[#allocation5 + $0xd0] sm:$0xff]
    %v119 = vld [vmem:[#allocation5 + $0xd8] sm:$0xff]
    %v120 = vld [vmem:[#allocation5 + $0xe0] sm:$0xff]
    %v121 = vld [vmem:[#allocation5 + $0xe8] sm:$0xff]
    %v122 = vld [vmem:[#allocation5 + $0xf0] sm:$0xff]
    %v123 = vld [vmem:[#allocation5 + $0xf8] sm:$0xff]
    %v124 = vld [vmem:[#allocation5 + $0x100] sm:$0xff]
    %v125 = vld [vmem:[#allocation5 + $0x108] sm:$0xff]
    %v126 = vld [vmem:[#allocation5 + $0x110] sm:$0xff]
    %v127 = vld [vmem:[#allocation5 + $0x118] sm:$0xff]
    %v128 = vld [vmem:[#allocation5 + $0x120] sm:$0xff]
    %v129 = vld [vmem:[#allocation5 + $0x128] sm:$0xff]
    %v130 = vld [vmem:[#allocation5 + $0x130] sm:$0xff]
    %v131 = vld [vmem:[#allocation5 + $0x138] sm:$0xff]
    %v132 = vld [vmem:[#allocation5 + $0x140] sm:$0xff]
    %v133 = vld [vmem:[#allocation5 + $0x148] sm:$0xff]
    %v134 = vld [vmem:[#allocation5 + $0x150] sm:$0xff]
    %v135 = vld [vmem:[#allocation5 + $0x158] sm:$0xff]
    %v136 = vld [vmem:[#allocation5 + $0x160] sm:$0xff]
    %v137 = vld [vmem:[#allocation5 + $0x168] sm:$0xff]
    %v138 = vld [vmem:[#allocation5 + $0x170] sm:$0xff]
    %v139 = vld [vmem:[#allocation5 + $0x178] sm:$0xff]
    %v140 = vld [vmem:[#allocation5 + $0x180] sm:$0xff]
    %v141 = vld [vmem:[#allocation5 + $0x188] sm:$0xff]
    %v142 = vld [vmem:[#allocation5 + $0x190] sm:$0xff]
    %v143 = vld [vmem:[#allocation5 + $0x198] sm:$0xff]
    %v144 = vld [vmem:[#allocation5 + $0x1a0] sm:$0xff]
    %v145 = vld [vmem:[#allocation5 + $0x1a8] sm:$0xff]
    %v146 = vld [vmem:[#allocation5 + $0x1b0] sm:$0xff]
    %v147 = vld [vmem:[#allocation5 + $0x1b8] sm:$0xff]
    %v148 = vld [vmem:[#allocation5 + $0x1c0] sm:$0xff]
    %v149 = vld [vmem:[#allocation5 + $0x1c8] sm:$0xff]
    %v150 = vld [vmem:[#allocation5 + $0x1d0] sm:$0xff]
    %v151 = vld [vmem:[#allocation5 + $0x1d8] sm:$0xff]
    %v152 = vld [vmem:[#allocation5 + $0x1e0] sm:$0xff]
    %v153 = vld [vmem:[#allocation5 + $0x1e8] sm:$0xff]
    %v154 = vld [vmem:[#allocation5 + $0x1f0] sm:$0xff]
    %v155 = vld [vmem:[#allocation5 + $0x1f8] sm:$0xff]
    %v156 = vld [vmem:[#allocation5 + $0x200] sm:$0xff]
    %v157 = vld [vmem:[#allocation5 + $0x208] sm:$0xff]
    %v158 = vld [vmem:[#allocation5 + $0x210] sm:$0xff]
    %v159 = vld [vmem:[#allocation5 + $0x218] sm:$0xff]
    %v160 = vld [vmem:[#allocation5 + $0x220] sm:$0xff]
    %v161 = vld [vmem:[#allocation5 + $0x228] sm:$0xff]
    %v162 = vld [vmem:[#allocation5 + $0x230] sm:$0xff]
    %v163 = vld [vmem:[#allocation5 + $0x238] sm:$0xff]
    %v164 = vld [vmem:[#allocation5 + $0x240] sm:$0xff]
    %v165 = vld [vmem:[#allocation5 + $0x248] sm:$0xff]
    %v166 = vld [vmem:[#allocation5 + $0x250] sm:$0xff]
    %v167 = vld [vmem:[#allocation5 + $0x258] sm:$0xff]
    %v168 = vld [vmem:[#allocation5 + $0x260] sm:$0xff]
    %v169 = vld [vmem:[#allocation5 + $0x268] sm:$0xff]
    %v170 = vld [vmem:[#allocation5 + $0x270] sm:$0xff]
    %v171 = vld [vmem:[#allocation5 + $0x278] sm:$0xff]
    %v172 = vld [vmem:[%s2] sm:$0x1]
    %v174 = vlaneseq
    %v175 = vshrl.u32 %v174, 7
    %v176 = vsub.s32 0, %v175
    %v177 = vrot.slane %v172, %v176
    %179 = vmatprep.subr.mxu0 0.0
    %180 = vmatpush1.msra.mxu0 %v92
    %181 = vmatprep.subr.mxu0 0.0
    %182 = vmatpush1.msra.mxu0 %v93
    %183 = vmatprep.subr.mxu0 0.0
    %184 = vmatpush1.msra.mxu0 %v94
    %185 = vmatprep.subr.mxu0 0.0
    %186 = vmatpush1.msra.mxu0 %v95
    %187 = vmatprep.subr.mxu0 0.0
    %188 = vmatpush1.msra.mxu0 %v96
    %189 = vmatprep.subr.mxu0 0.0
    %190 = vmatpush1.msra.mxu0 %v97
    %191 = vmatprep.subr.mxu0 0.0
    %192 = vmatpush1.msra.mxu0 %v98
    %193 = vmatprep.subr.mxu0 0.0
    %194 = vmatpush1.msra.mxu0 %v99
    %195 = vmatprep.subr.mxu0 0.0
    %196 = vmatpush1.msra.mxu0 %v100
    %197 = vmatprep.subr.mxu0 0.0
    %198 = vmatpush1.msra.mxu0 %v101
    %199 = vmatprep.subr.mxu0 0.0
    %200 = vmatpush1.msra.mxu0 %v102
    %201 = vmatprep.subr.mxu0 0.0
    %202 = vmatpush1.msra.mxu0 %v103
    %203 = vmatprep.subr.mxu0 0.0
    %204 = vmatpush1.msra.mxu0 %v104
    %205 = vmatprep.subr.mxu0 0.0
    %206 = vmatpush1.msra.mxu0 %v105
    %207 = vmatprep.subr.mxu0 0.0
    %208 = vmatpush1.msra.mxu0 %v106
    %209 = vmatprep.subr.mxu0 0.0
    %210 = vmatpush1.msra.mxu0 %v107
    %211 = vmatprep.subr.mxu0 0.0
    %212 = vmatpush1.msra.mxu0 %v108
    %213 = vmatprep.subr.mxu0 0.0
    %214 = vmatpush1.msra.mxu0 %v109
    %215 = vmatprep.subr.mxu0 0.0
    %216 = vmatpush1.msra.mxu0 %v110
    %217 = vmatprep.subr.mxu0 0.0
    %218 = vmatpush1.msra.mxu0 %v111
    %219 = vmatprep.subr.mxu0 0.0
    %220 = vmatpush1.msra.mxu0 %v112
    %221 = vmatprep.subr.mxu0 0.0
    %222 = vmatpush1.msra.mxu0 %v113
    %223 = vmatprep.subr.mxu0 0.0
    %224 = vmatpush1.msra.mxu0 %v114
    %225 = vmatprep.subr.mxu0 0.0
    %226 = vmatpush1.msra.mxu0 %v115
    %227 = vmatprep.subr.mxu0 0.0
    %228 = vmatpush1.msra.mxu0 %v116
    %229 = vmatprep.subr.mxu0 0.0
    %230 = vmatpush1.msra.mxu0 %v117
    %231 = vmatprep.subr.mxu0 0.0
    %232 = vmatpush1.msra.mxu0 %v118
    %233 = vmatprep.subr.mxu0 0.0
    %234 = vmatpush1.msra.mxu0 %v119
    %235 = vmatprep.subr.mxu0 0.0
    %236 = vmatpush1.msra.mxu0 %v120
    %237 = vmatprep.subr.mxu0 0.0
    %238 = vmatpush1.msra.mxu0 %v121
    %239 = vmatprep.subr.mxu0 0.0
    %240 = vmatpush1.msra.mxu0 %v122
    %241 = vmatprep.subr.mxu0 0.0
    %242 = vmatpush1.msra.mxu0 %v123
    %243 = vmatprep.mubr.f32.mxu0 %v63
    %244 = vmatmul.mubr.f32.gmra.mrb[0].mxu0 %v62
    %v245 = vpop.f32.mrb[0].mxu0
    %v246 = vadd.f32 %v177, %v245
    %v247 = vpop.f32.mrb[0].mxu0
    %248 = vmatprep.mubr.f32.mxu0 %v68
    %249 = vmatmul.mubr.f32.gmra.mrb[0].mxu0 %v67
    %v250 = vpop.f32.mrb[0].mxu0
    %v251 = vadd.f32 %v177, %v250
    %v252 = vpop.f32.mrb[0].mxu0
    %253 = vmatprep.mubr.f32.mxu0 %v73
    %254 = vmatmul.mubr.f32.gmra.mrb[0].mxu0 %v72
    %v255 = vpop.f32.mrb[0].mxu0
    %v256 = vadd.f32 %v177, %v255
    %v257 = vpop.f32.mrb[0].mxu0
    %258 = vmatprep.mubr.f32.mxu0 %v78
    %259 = vmatmul.mubr.f32.gmra.mrb[0].mxu0 %v77
    %v260 = vpop.f32.mrb[0].mxu0
    %v261 = vadd.f32 %v177, %v260
    %v262 = vpop.f32.mrb[0].mxu0
    %263 = vmatprep.mubr.f32.mxu0 %v83
    %264 = vmatmul.mubr.f32.gmra.mrb[0].mxu0 %v82
    %v265 = vpop.f32.mrb[0].mxu0
    %v266 = vadd.f32 %v177, %v265
    %v267 = vpop.f32.mrb[0].mxu0
    %268 = vmatprep.mubr.f32.mxu0 %v88
    %269 = vmatmul.mubr.f32.gmra.mrb[0].mxu0 %v87
    %v270 = vpop.f32.mrb[0].mxu0
    %v271 = vadd.f32 %v177, %v270
    %v272 = vpop.f32.mrb[0].mxu0
    %273 = vdwg.mxu0
    %274 = vmatprep.subr.mxu0 0.0
    %275 = vmatpush1.msra.mxu0 %v124
    %276 = vmatprep.subr.mxu0 0.0
    %277 = vmatpush1.msra.mxu0 %v125
    %278 = vmatprep.subr.mxu0 0.0
    %279 = vmatpush1.msra.mxu0 %v126
    %280 = vmatprep.subr.mxu0 0.0
    %281 = vmatpush1.msra.mxu0 %v127
    %282 = vmatprep.subr.mxu0 0.0
    %283 = vmatpush1.msra.mxu0 %v128
    %284 = vmatprep.subr.mxu0 0.0
    %285 = vmatpush1.msra.mxu0 %v129
    %286 = vmatprep.subr.mxu0 0.0
    %287 = vmatpush1.msra.mxu0 %v130
    %288 = vmatprep.subr.mxu0 0.0
    %289 = vmatpush1.msra.mxu0 %v131
    %290 = vmatprep.subr.mxu0 0.0
    %291 = vmatpush1.msra.mxu0 %v132
    %292 = vmatprep.subr.mxu0 0.0
    %293 = vmatpush1.msra.mxu0 %v133
    %294 = vmatprep.subr.mxu0 0.0
    %295 = vmatpush1.msra.mxu0 %v134
    %296 = vmatprep.subr.mxu0 0.0
    %297 = vmatpush1.msra.mxu0 %v135
    %298 = vmatprep.subr.mxu0 0.0
    %299 = vmatpush1.msra.mxu0 %v136
    %300 = vmatprep.subr.mxu0 0.0
    %301 = vmatpush1.msra.mxu0 %v137
    %302 = vmatprep.subr.mxu0 0.0
    %303 = vmatpush1.msra.mxu0 %v138
    %304 = vmatprep.subr.mxu0 0.0
    %305 = vmatpush1.msra.mxu0 %v139
    %306 = vmatprep.subr.mxu0 0.0
    %307 = vmatpush1.msra.mxu0 %v140
    %308 = vmatprep.subr.mxu0 0.0
    %309 = vmatpush1.msra.mxu0 %v141
    %310 = vmatprep.subr.mxu0 0.0
    %311 = vmatpush1.msra.mxu0 %v142
    %312 = vmatprep.subr.mxu0 0.0
    %313 = vmatpush1.msra.mxu0 %v143
    %314 = vmatprep.subr.mxu0 0.0
    %315 = vmatpush1.msra.mxu0 %v144
    %316 = vmatprep.subr.mxu0 0.0
    %317 = vmatpush1.msra.mxu0 %v145
    %318 = vmatprep.subr.mxu0 0.0
    %319 = vmatpush1.msra.mxu0 %v146
    %320 = vmatprep.subr.mxu0 0.0
    %321 = vmatpush1.msra.mxu0 %v147
    %322 = vmatprep.subr.mxu0 0.0
    %323 = vmatpush1.msra.mxu0 %v148
    %324 = vmatprep.subr.mxu0 0.0
    %325 = vmatpush1.msra.mxu0 %v149
    %326 = vmatprep.subr.mxu0 0.0
    %327 = vmatpush1.msra.mxu0 %v150
    %328 = vmatprep.subr.mxu0 0.0
    %329 = vmatpush1.msra.mxu0 %v151
    %330 = vmatprep.subr.mxu0 0.0
    %331 = vmatpush1.msra.mxu0 %v152
    %332 = vmatprep.subr.mxu0 0.0
    %333 = vmatpush1.msra.mxu0 %v153
    %334 = vmatprep.subr.mxu0 0.0
    %335 = vmatpush1.msra.mxu0 %v154
    %336 = vmatprep.subr.mxu0 0.0
    %337 = vmatpush1.msra.mxu0 %v155
    %338 = vmatprep.mubr.f32.mxu0 %v65
    %339 = vmatmul.mubr.f32.gmra.mrb[0].mxu0 %v64
    %v340 = vpop.f32.mrb[0].mxu0
    %v341 = vadd.f32 %v246, %v340
    %v342 = vpop.f32.mrb[0].mxu0
    %343 = vmatprep.mubr.f32.mxu0 %v70
    %344 = vmatmul.mubr.f32.gmra.mrb[0].mxu0 %v69
    %v345 = vpop.f32.mrb[0].mxu0
    %v346 = vadd.f32 %v251, %v345
    %v347 = vpop.f32.mrb[0].mxu0
    %348 = vmatprep.mubr.f32.mxu0 %v75
    %349 = vmatmul.mubr.f32.gmra.mrb[0].mxu0 %v74
    %v350 = vpop.f32.mrb[0].mxu0
    %v351 = vadd.f32 %v256, %v350
    %v352 = vpop.f32.mrb[0].mxu0
    %353 = vmatprep.mubr.f32.mxu0 %v80
    %354 = vmatmul.mubr.f32.gmra.mrb[0].mxu0 %v79
    %v355 = vpop.f32.mrb[0].mxu0
    %v356 = vadd.f32 %v261, %v355
    %v357 = vpop.f32.mrb[0].mxu0
    %358 = vmatprep.mubr.f32.mxu0 %v85
    %359 = vmatmul.mubr.f32.gmra.mrb[0].mxu0 %v84
    %v360 = vpop.f32.mrb[0].mxu0
    %v361 = vadd.f32 %v266, %v360
    %v362 = vpop.f32.mrb[0].mxu0
    %363 = vmatprep.mubr.f32.mxu0 %v90
    %364 = vmatmul.mubr.f32.gmra.mrb[0].mxu0 %v89
    %v365 = vpop.f32.mrb[0].mxu0
    %v366 = vadd.f32 %v271, %v365
    %v367 = vpop.f32.mrb[0].mxu0
    %368 = vdwg.mxu0
    %369 = vmatprep.subr.mxu0 0.0
    %370 = vmatpush1.msra.mxu0 %v156
    %371 = vmatprep.subr.mxu0 0.0
    %372 = vmatpush1.msra.mxu0 %v157
    %373 = vmatprep.subr.mxu0 0.0
    %374 = vmatpush1.msra.mxu0 %v158
    %375 = vmatprep.subr.mxu0 0.0
    %376 = vmatpush1.msra.mxu0 %v159
    %377 = vmatprep.subr.mxu0 0.0
    %378 = vmatpush1.msra.mxu0 %v160
    %379 = vmatprep.subr.mxu0 0.0
    %380 = vmatpush1.msra.mxu0 %v161
    %381 = vmatprep.subr.mxu0 0.0
    %382 = vmatpush1.msra.mxu0 %v162
    %383 = vmatprep.subr.mxu0 0.0
    %384 = vmatpush1.msra.mxu0 %v163
    %385 = vmatprep.subr.mxu0 0.0
    %386 = vmatpush1.msra.mxu0 %v164
    %387 = vmatprep.subr.mxu0 0.0
    %388 = vmatpush1.msra.mxu0 %v165
    %389 = vmatprep.subr.mxu0 0.0
    %390 = vmatpush1.msra.mxu0 %v166
    %391 = vmatprep.subr.mxu0 0.0
    %392 = vmatpush1.msra.mxu0 %v167
    %393 = vmatprep.subr.mxu0 0.0
    %394 = vmatpush1.msra.mxu0 %v168
    %395 = vmatprep.subr.mxu0 0.0
    %396 = vmatpush1.msra.mxu0 %v169
    %397 = vmatprep.subr.mxu0 0.0
    %398 = vmatpush1.msra.mxu0 %v170
    %399 = vmatprep.subr.mxu0 0.0
    %400 = vmatpush1.msra.mxu0 %v171
    %401 = vmatprep.subr.mxu0 0.0
    %402 = vmatpush1.msra.mxu0 0.0
    %403 = vmatprep.subr.mxu0 0.0
    %404 = vmatpush1.msra.mxu0 0.0
    %405 = vmatprep.subr.mxu0 0.0
    %406 = vmatpush1.msra.mxu0 0.0
    %407 = vmatprep.subr.mxu0 0.0
    %408 = vmatpush1.msra.mxu0 0.0
    %409 = vmatprep.subr.mxu0 0.0
    %410 = vmatpush1.msra.mxu0 0.0
    %411 = vmatprep.subr.mxu0 0.0
    %412 = vmatpush1.msra.mxu0 0.0
    %413 = vmatprep.subr.mxu0 0.0
    %414 = vmatpush1.msra.mxu0 0.0
    %415 = vmatprep.subr.mxu0 0.0
    %416 = vmatpush1.msra.mxu0 0.0
    %417 = vmatprep.subr.mxu0 0.0
    %418 = vmatpush1.msra.mxu0 0.0
    %419 = vmatprep.subr.mxu0 0.0
    %420 = vmatpush1.msra.mxu0 0.0
    %421 = vmatprep.subr.mxu0 0.0
    %422 = vmatpush1.msra.mxu0 0.0
    %423 = vmatprep.subr.mxu0 0.0
    %424 = vmatpush1.msra.mxu0 0.0
    %425 = vmatprep.subr.mxu0 0.0
    %426 = vmatpush1.msra.mxu0 0.0
    %427 = vmatprep.subr.mxu0 0.0
    %428 = vmatpush1.msra.mxu0 0.0
    %429 = vmatprep.subr.mxu0 0.0
    %430 = vmatpush1.msra.mxu0 0.0
    %431 = vmatprep.subr.mxu0 0.0
    %432 = vmatpush1.msra.mxu0 0.0
    %433 = vmatprep.mubr.f32.mxu0 0.0
    %434 = vmatmul.mubr.f32.gmra.mrb[0].mxu0 %v66
    %v435 = vpop.f32.mrb[0].mxu0
    %v436 = vadd.f32 %v341, %v435
    %v437 = vpop.f32.mrb[0].mxu0
    %438 = vmatprep.mubr.f32.mxu0 0.0
    %439 = vmatmul.mubr.f32.gmra.mrb[0].mxu0 %v71
    %v440 = vpop.f32.mrb[0].mxu0
    %v441 = vadd.f32 %v346, %v440
    %v442 = vpop.f32.mrb[0].mxu0
    %443 = vmatprep.mubr.f32.mxu0 0.0
    %444 = vmatmul.mubr.f32.gmra.mrb[0].mxu0 %v76
    %v445 = vpop.f32.mrb[0].mxu0
    %v446 = vadd.f32 %v351, %v445
    %v447 = vpop.f32.mrb[0].mxu0
    %448 = vmatprep.mubr.f32.mxu0 0.0
    %449 = vmatmul.mubr.f32.gmra.mrb[0].mxu0 %v81
    %v450 = vpop.f32.mrb[0].mxu0
    %v451 = vadd.f32 %v356, %v450
    %v452 = vpop.f32.mrb[0].mxu0
    %453 = vmatprep.mubr.f32.mxu0 0.0
    %454 = vmatmul.mubr.f32.gmra.mrb[0].mxu0 %v86
    %v455 = vpop.f32.mrb[0].mxu0
    %v456 = vadd.f32 %v361, %v455
    %v457 = vpop.f32.mrb[0].mxu0
    %458 = vmatprep.mubr.f32.mxu0 0.0
    %459 = vmatmul.mubr.f32.gmra.mrb[0].mxu0 %v91
    %v460 = vpop.f32.mrb[0].mxu0
    %v461 = vadd.f32 %v366, %v460
    %v462 = vpop.f32.mrb[0].mxu0
    %463 = vdwg.mxu0
    %v464 = vmax.f32 %v436, 0.0
    %v465 = vmax.f32 %v441, 0.0
    %v466 = vmax.f32 %v446, 0.0
    %v467 = vmax.f32 %v451, 0.0
    %v468 = vmax.f32 %v456, 0.0
    %v469 = vmax.f32 %v461, 0.0
    %v470 = vand.u32 2147483647, %v436
    %v471 = vand.u32 2147483647, %v441
    %v472 = vand.u32 2147483647, %v446
    %v473 = vand.u32 2147483647, %v451
    %v474 = vand.u32 2147483647, %v456
    %v475 = vand.u32 2147483647, %v461
    %v476 = vsub.f32 0.0, %v470
    %v477 = vsub.f32 0.0, %v471
    %v478 = vsub.f32 0.0, %v472
    %v479 = vsub.f32 0.0, %v473
    %v480 = vsub.f32 0.0, %v474
    %v481 = vsub.f32 0.0, %v475
    %v482 = vmul.f32 %v476, 1.442695
    %v483 = vpow.pop %v482
    %v484 = vmul.f32 %v477, 1.442695
    %v485 = vpow.pop %v484
    %v486 = vmul.f32 %v478, 1.442695
    %v487 = vpow.pop %v486
    %v488 = vmul.f32 %v479, 1.442695
    %v489 = vpow.pop %v488
    %v490 = vmul.f32 %v480, 1.442695
    %v491 = vpow.pop %v490
    %v492 = vmul.f32 %v481, 1.442695
    %v493 = vpow.pop %v492
    %v494 = vadd.f32 %v483, 1.0
    %v495 = vlog2.pop %v494
    %v496 = vmul.f32 %v495, 0.6931472
    %v497 = vmul.f32 -0.5, %v483
    %v498 = vadd.f32 %v497, 1.0
    %v499 = vmul.f32 %v498, %v483
    %v500 = vand.u32 2147483647, %v483
    %vm501 = vcmp.lt.f32.partialorder %v500, 0.0004427343
    %v502 = vsel %vm501, %v499, %v496
    %v503 = vadd.f32 %v485, 1.0
    %v504 = vlog2.pop %v503
    %v505 = vmul.f32 %v504, 0.6931472
    %v506 = vmul.f32 -0.5, %v485
    %v507 = vadd.f32 %v506, 1.0
    %v508 = vmul.f32 %v507, %v485
    %v509 = vand.u32 2147483647, %v485
    %vm510 = vcmp.lt.f32.partialorder %v509, 0.0004427343
    %v511 = vsel %vm510, %v508, %v505
    %v512 = vadd.f32 %v487, 1.0
    %v513 = vlog2.pop %v512
    %v514 = vmul.f32 %v513, 0.6931472
    %v515 = vmul.f32 -0.5, %v487
    %v516 = vadd.f32 %v515, 1.0
    %v517 = vmul.f32 %v516, %v487
    %v518 = vand.u32 2147483647, %v487
    %vm519 = vcmp.lt.f32.partialorder %v518, 0.0004427343
    %v520 = vsel %vm519, %v517, %v514
    %v521 = vadd.f32 %v489, 1.0
    %v522 = vlog2.pop %v521
    %v523 = vmul.f32 %v522, 0.6931472
    %v524 = vmul.f32 -0.5, %v489
    %v525 = vadd.f32 %v524, 1.0
    %v526 = vmul.f32 %v525, %v489
    %v527 = vand.u32 2147483647, %v489
    %vm528 = vcmp.lt.f32.partialorder %v527, 0.0004427343
    %v529 = vsel %vm528, %v526, %v523
    %v530 = vadd.f32 %v491, 1.0
    %v531 = vlog2.pop %v530
    %v532 = vmul.f32 %v531, 0.6931472
    %v533 = vmul.f32 -0.5, %v491
    %v534 = vadd.f32 %v533, 1.0
    %v535 = vmul.f32 %v534, %v491
    %v536 = vand.u32 2147483647, %v491
    %vm537 = vcmp.lt.f32.partialorder %v536, 0.0004427343
    %v538 = vsel %vm537, %v535, %v532
    %v539 = vadd.f32 %v493, 1.0
    %v540 = vlog2.pop %v539
    %v541 = vmul.f32 %v540, 0.6931472
    %v542 = vmul.f32 -0.5, %v493
    %v543 = vadd.f32 %v542, 1.0
    %v544 = vmul.f32 %v543, %v493
    %v545 = vand.u32 2147483647, %v493
    %vm546 = vcmp.lt.f32.partialorder %v545, 0.0004427343
    %v547 = vsel %vm546, %v544, %v541
    %v548 = vadd.f32 %v464, %v502
    %v549 = vadd.f32 %v465, %v511
    %v550 = vadd.f32 %v466, %v520
    %v551 = vadd.f32 %v467, %v529
    %v552 = vadd.f32 %v468, %v538
    %v553 = vadd.f32 %v469, %v547
    %v554 = vld [vmem:[#allocation7] sm:$0xff]
    %v555 = vld [vmem:[#allocation7 + $0x8] sm:$0xff]
    %v556 = vld [vmem:[#allocation7 + $0x10] sm:$0xff]
    %v557 = vld [vmem:[#allocation7 + $0x18] sm:$0xff]
    %v558 = vld [vmem:[#allocation7 + $0x20] sm:$0xff]
    %v559 = vld [vmem:[#allocation7 + $0x28] sm:$0xff]
    %v560 = vld [vmem:[#allocation7 + $0x30] sm:$0xff]
    %v561 = vld [vmem:[#allocation7 + $0x38] sm:$0xff]
    %v562 = vld [vmem:[#allocation7 + $0x40] sm:$0xff]
    %v563 = vld [vmem:[#allocation7 + $0x48] sm:$0xff]
    %v564 = vld [vmem:[#allocation7 + $0x50] sm:$0xff]
    %v565 = vld [vmem:[#allocation7 + $0x58] sm:$0xff]
    %v566 = vld [vmem:[#allocation7 + $0x60] sm:$0xff]
    %v567 = vld [vmem:[#allocation7 + $0x68] sm:$0xff]
    %v568 = vld [vmem:[#allocation7 + $0x70] sm:$0xff]
    %v569 = vld [vmem:[#allocation7 + $0x78] sm:$0xff]
    %v570 = vld [vmem:[%s4] sm:$0x1]
    %v572 = vlaneseq
    %v573 = vshrl.u32 %v572, 7
    %v574 = vsub.s32 0, %v573
    %v575 = vrot.slane %v570, %v574
    %577 = vmatprep.subr.mxu0 0.0
    %578 = vmatpush1.msra.mxu0 %v554
    %579 = vmatprep.subr.mxu0 0.0
    %580 = vmatpush1.msra.mxu0 %v555
    %581 = vmatprep.subr.mxu0 0.0
    %582 = vmatpush1.msra.mxu0 %v556
    %583 = vmatprep.subr.mxu0 0.0
    %584 = vmatpush1.msra.mxu0 %v557
    %585 = vmatprep.subr.mxu0 0.0
    %586 = vmatpush1.msra.mxu0 %v558
    %587 = vmatprep.subr.mxu0 0.0
    %588 = vmatpush1.msra.mxu0 %v559
    %589 = vmatprep.subr.mxu0 0.0
    %590 = vmatpush1.msra.mxu0 %v560
    %591 = vmatprep.subr.mxu0 0.0
    %592 = vmatpush1.msra.mxu0 %v561
    %593 = vmatprep.subr.mxu0 0.0
    %594 = vmatpush1.msra.mxu0 %v562
    %595 = vmatprep.subr.mxu0 0.0
    %596 = vmatpush1.msra.mxu0 %v563
    %597 = vmatprep.subr.mxu0 0.0
    %598 = vmatpush1.msra.mxu0 %v564
    %599 = vmatprep.subr.mxu0 0.0
    %600 = vmatpush1.msra.mxu0 %v565
    %601 = vmatprep.subr.mxu0 0.0
    %602 = vmatpush1.msra.mxu0 %v566
    %603 = vmatprep.subr.mxu0 0.0
    %604 = vmatpush1.msra.mxu0 %v567
    %605 = vmatprep.subr.mxu0 0.0
    %606 = vmatpush1.msra.mxu0 %v568
    %607 = vmatprep.subr.mxu0 0.0
    %608 = vmatpush1.msra.mxu0 %v569
    %609 = vmatprep.subr.mxu0 0.0
    %610 = vmatpush1.msra.mxu0 0.0
    %611 = vmatprep.subr.mxu0 0.0
    %612 = vmatpush1.msra.mxu0 0.0
    %613 = vmatprep.subr.mxu0 0.0
    %614 = vmatpush1.msra.mxu0 0.0
    %615 = vmatprep.subr.mxu0 0.0
    %616 = vmatpush1.msra.mxu0 0.0
    %617 = vmatprep.subr.mxu0 0.0
    %618 = vmatpush1.msra.mxu0 0.0
    %619 = vmatprep.subr.mxu0 0.0
    %620 = vmatpush1.msra.mxu0 0.0
    %621 = vmatprep.subr.mxu0 0.0
    %622 = vmatpush1.msra.mxu0 0.0
    %623 = vmatprep.subr.mxu0 0.0
    %624 = vmatpush1.msra.mxu0 0.0
    %625 = vmatprep.subr.mxu0 0.0
    %626 = vmatpush1.msra.mxu0 0.0
    %627 = vmatprep.subr.mxu0 0.0
    %628 = vmatpush1.msra.mxu0 0.0
    %629 = vmatprep.subr.mxu0 0.0
    %630 = vmatpush1.msra.mxu0 0.0
    %631 = vmatprep.subr.mxu0 0.0
    %632 = vmatpush1.msra.mxu0 0.0
    %633 = vmatprep.subr.mxu0 0.0
    %634 = vmatpush1.msra.mxu0 0.0
    %635 = vmatprep.subr.mxu0 0.0
    %636 = vmatpush1.msra.mxu0 0.0
    %637 = vmatprep.subr.mxu0 0.0
    %638 = vmatpush1.msra.mxu0 0.0
    %639 = vmatprep.subr.mxu0 0.0
    %640 = vmatpush1.msra.mxu0 0.0
    %641 = vmatprep.mubr.f32.mxu0 0.0
    %642 = vmatmul.mubr.f32.gmra.mrb[0].mxu0 %v548
    %v643 = vpop.f32.mrb[0].mxu0
    %v644 = vadd.f32 %v575, %v643
    %v645 = vpop.f32.mrb[0].mxu0
    %646 = vmatprep.mubr.f32.mxu0 0.0
    %647 = vmatmul.mubr.f32.gmra.mrb[0].mxu0 %v549
    %v648 = vpop.f32.mrb[0].mxu0
    %v649 = vadd.f32 %v575, %v648
    %v650 = vpop.f32.mrb[0].mxu0
    %651 = vmatprep.mubr.f32.mxu0 0.0
    %652 = vmatmul.mubr.f32.gmra.mrb[0].mxu0 %v550
    %v653 = vpop.f32.mrb[0].mxu0
    %v654 = vadd.f32 %v575, %v653
    %v655 = vpop.f32.mrb[0].mxu0
    %656 = vmatprep.mubr.f32.mxu0 0.0
    %657 = vmatmul.mubr.f32.gmra.mrb[0].mxu0 %v551
    %v658 = vpop.f32.mrb[0].mxu0
    %v659 = vadd.f32 %v575, %v658
    %v660 = vpop.f32.mrb[0].mxu0
    %661 = vmatprep.mubr.f32.mxu0 0.0
    %662 = vmatmul.mubr.f32.gmra.mrb[0].mxu0 %v552
    %v663 = vpop.f32.mrb[0].mxu0
    %v664 = vadd.f32 %v575, %v663
    %v665 = vpop.f32.mrb[0].mxu0
    %666 = vmatprep.mubr.f32.mxu0 0.0
    %667 = vmatmul.mubr.f32.gmra.mrb[0].mxu0 %v553
    %v668 = vpop.f32.mrb[0].mxu0
    %v669 = vadd.f32 %v575, %v668
    %v670 = vpop.f32.mrb[0].mxu0
    %671 = vdwg.mxu0
    %v672 = vmax.f32 %v644, 0.0
    %v673 = vmax.f32 %v649, 0.0
    %v674 = vmax.f32 %v654, 0.0
    %v675 = vmax.f32 %v659, 0.0
    %v676 = vmax.f32 %v664, 0.0
    %v677 = vmax.f32 %v669, 0.0
    %v678 = vand.u32 2147483647, %v644
    %v679 = vand.u32 2147483647, %v649
    %v680 = vand.u32 2147483647, %v654
    %v681 = vand.u32 2147483647, %v659
    %v682 = vand.u32 2147483647, %v664
    %v683 = vand.u32 2147483647, %v669
    %v684 = vsub.f32 0.0, %v678
    %v685 = vsub.f32 0.0, %v679
    %v686 = vsub.f32 0.0, %v680
    %v687 = vsub.f32 0.0, %v681
    %v688 = vsub.f32 0.0, %v682
    %v689 = vsub.f32 0.0, %v683
    %v690 = vmul.f32 %v684, 1.442695
    %v691 = vpow.pop %v690
    %v692 = vmul.f32 %v685, 1.442695
    %v693 = vpow.pop %v692
    %v694 = vmul.f32 %v686, 1.442695
    %v695 = vpow.pop %v694
    %v696 = vmul.f32 %v687, 1.442695
    %v697 = vpow.pop %v696
    %v698 = vmul.f32 %v688, 1.442695
    %v699 = vpow.pop %v698
    %v700 = vmul.f32 %v689, 1.442695
    %v701 = vpow.pop %v700
    %v702 = vadd.f32 %v691, 1.0
    %v703 = vlog2.pop %v702
    %v704 = vmul.f32 %v703, 0.6931472
    %v705 = vmul.f32 -0.5, %v691
    %v706 = vadd.f32 %v705, 1.0
    %v707 = vmul.f32 %v706, %v691
    %v708 = vand.u32 2147483647, %v691
    %vm709 = vcmp.lt.f32.partialorder %v708, 0.0004427343
    %v710 = vsel %vm709, %v707, %v704
    %v711 = vadd.f32 %v693, 1.0
    %v712 = vlog2.pop %v711
    %v713 = vmul.f32 %v712, 0.6931472
    %v714 = vmul.f32 -0.5, %v693
    %v715 = vadd.f32 %v714, 1.0
    %v716 = vmul.f32 %v715, %v693
    %v717 = vand.u32 2147483647, %v693
    %vm718 = vcmp.lt.f32.partialorder %v717, 0.0004427343
    %v719 = vsel %vm718, %v716, %v713
    %v720 = vadd.f32 %v695, 1.0
    %v721 = vlog2.pop %v720
    %v722 = vmul.f32 %v721, 0.6931472
    %v723 = vmul.f32 -0.5, %v695
    %v724 = vadd.f32 %v723, 1.0
    %v725 = vmul.f32 %v724, %v695
    %v726 = vand.u32 2147483647, %v695
    %vm727 = vcmp.lt.f32.partialorder %v726, 0.0004427343
    %v728 = vsel %vm727, %v725, %v722
    %v729 = vadd.f32 %v697, 1.0
    %v730 = vlog2.pop %v729
    %v731 = vmul.f32 %v730, 0.6931472
    %v732 = vmul.f32 -0.5, %v697
    %v733 = vadd.f32 %v732, 1.0
    %v734 = vmul.f32 %v733, %v697
    %v735 = vand.u32 2147483647, %v697
    %vm736 = vcmp.lt.f32.partialorder %v735, 0.0004427343
    %v737 = vsel %vm736, %v734, %v731
    %v738 = vadd.f32 %v699, 1.0
    %v739 = vlog2.pop %v738
    %v740 = vmul.f32 %v739, 0.6931472
    %v741 = vmul.f32 -0.5, %v699
    %v742 = vadd.f32 %v741, 1.0
    %v743 = vmul.f32 %v742, %v699
    %v744 = vand.u32 2147483647, %v699
    %vm745 = vcmp.lt.f32.partialorder %v744, 0.0004427343
    %v746 = vsel %vm745, %v743, %v740
    %v747 = vadd.f32 %v701, 1.0
    %v748 = vlog2.pop %v747
    %v749 = vmul.f32 %v748, 0.6931472
    %v750 = vmul.f32 -0.5, %v701
    %v751 = vadd.f32 %v750, 1.0
    %v752 = vmul.f32 %v751, %v701
    %v753 = vand.u32 2147483647, %v701
    %vm754 = vcmp.lt.f32.partialorder %v753, 0.0004427343
    %v755 = vsel %vm754, %v752, %v749
    %v756 = vadd.f32 %v672, %v710
    %v757 = vadd.f32 %v673, %v719
    %v758 = vadd.f32 %v674, %v728
    %v759 = vadd.f32 %v675, %v737
    %v760 = vadd.f32 %v676, %v746
    %v761 = vadd.f32 %v677, %v755
    %762 = vst [vmem:[#allocation8] sm:$0xff] %v756
    %763 = vst [vmem:[#allocation8 + $0x8] sm:$0xff] %v757
    %764 = vst [vmem:[#allocation8 + $0x10] sm:$0xff] %v758
    %765 = vst [vmem:[#allocation8 + $0x18] sm:$0xff] %v759
    %766 = vst [vmem:[#allocation8 + $0x20] sm:$0xff] %v760
    %767 = vst [vmem:[#allocation8 + $0x28] sm:$0xff] %v761
    // Predicated region
    $region34: #{tpu_custom_call.1} parent=1 // pred_check
      _
    $region35: #{tpu_custom_call.1} parent=1 // pred_check_branch
      %769 = sbr.rel (0) target = $region37
    $region36: #{tpu_custom_call.1} parent=1 // pred_region
      %s771 = ssub.s32 768, 768
      %772 = vsyncadd [#allocation4], %s771
      %s773 = sshll.u32 [#allocation8], 4
      %s774 = int_to_ptr.vmem [resolvable:$true] %s773
      %779 = dma.vmem_to_hbm [thread:$0]  %s774, 768, %s5, [#allocation4], 128, 128, 8
    $region37: #{tpu_custom_call.1} parent=1 // pred_fallthru
      _
    // Predicated region
    $region38: #{tpu_custom_call.1} parent=1 // pred_check
      _
    $region39: #{tpu_custom_call.1} parent=1 // pred_check_branch
      %781 = sbr.rel (0) target = $region41
    $region40: #{tpu_custom_call.1} parent=1 // pred_region
      %782 = dma.done [#allocation4], 768
    $region41: #{tpu_custom_call.1} parent=1 // pred_fallthru
      _
    %783 = vsyncpa [#allocation3], 1
    %784 = vsyncpa [#allocation6], 1
    %785 = vsyncpa [#allocation4], 1

</llo_original>
